<compile_context>
chip_gen: v7x
topology: tpu7x:2x2x1
jax: 0.10.0
libtpu: 0.0.40
codegen_flags: <defaults>
</compile_context>

<pallas_src>
import jax
import jax.numpy as jnp
from jax.experimental import pallas as pl
from jax.experimental.pallas import tpu as pltpu


# ----------------------------- parameters ------------------------------------

def _orthogonal(key, shape, gain):
    """Deterministic orthogonal init (semantics of torch.nn.init.orthogonal_)."""
    rows, cols = shape
    n = max(rows, cols)
    a = jax.random.normal(key, (n, n), dtype=jnp.float32)
    q, r = jnp.linalg.qr(a)
    d = jnp.diag(r)
    q = q * jnp.where(d == 0, 1.0, jnp.sign(d))[None, :]   # guard sign(0) == 0
    return gain * q[:rows, :cols]


def make_params(num_actions, seed=0):
    """Returns (w1, b1, w2, b2) with w stored as (in, out), b as (1, out)."""
    k1, k2 = jax.random.split(jax.random.PRNGKey(seed))
    gain_relu = float(jnp.sqrt(2.0))          # nn.init.calculate_gain('relu')
    # inverse_dynamics: Linear(2*128, 256), orthogonal(gain=sqrt(2)), bias 0
    w1 = _orthogonal(k1, (256, 2 * 128), gain_relu).T       # (256_in, 256_out)
    b1 = jnp.zeros((1, 256), dtype=jnp.float32)
    # id_out: Linear(256, num_actions), orthogonal(gain=1), bias 0
    w2 = _orthogonal(k2, (num_actions, 256), 1.0).T         # (256, num_actions)
    b2 = jnp.zeros((1, num_actions), dtype=jnp.float32)
    return (w1, b1, w2, b2)


def prepare_params(params, compute_dtype=jnp.float32):
    """One-time weight preprocessing (done at init, NOT per forward call)."""
    w1, b1, w2, b2 = params
    D = 128
    H, A = w2.shape                                          # (256, num_actions)
    A_pad = pl.cdiv(A, 128) * 128                            # lane-dense output slab
    return {
        "w1":  jnp.asarray(w1, compute_dtype),               # (256, 256) fused K=256 path
        "w1a": jnp.asarray(w1[:D], compute_dtype),           # (128, 256) split K=128 path
        "w1b": jnp.asarray(w1[D:], compute_dtype),           # (128, 256)
        "b1":  jnp.asarray(b1, jnp.float32),                 # (1, 256)
        "w2p": jnp.zeros((H, A_pad), compute_dtype).at[:, :A].set(
            w2.astype(compute_dtype)),                       # (256, A_pad)
        "b2p": jnp.zeros((1, A_pad), jnp.float32).at[:, :A].set(
            b2.astype(jnp.float32)),                         # (1, A_pad)
        "num_actions": A,
        "compute_dtype": compute_dtype,
    }


# ------------------------------- kernels --------------------------------------

def _inverse_dynamics_kernel_fused(s_ref, ns_ref, w1_ref, b1_ref, w2_ref, b2_ref,
                                   o_ref, x_scr):
    # In-VMEM concat (cheap vst, hides under MXU) feeding a single K=256 matmul,
    # which fills the 256-deep MXU on v6e/v7x.
    d = s_ref.shape[-1]
    x_scr[:, :d] = s_ref[...].astype(x_scr.dtype)
    x_scr[:, d:] = ns_ref[...].astype(x_scr.dtype)
    h = (jnp.dot(x_scr[...], w1_ref[...], preferred_element_type=jnp.float32)
         + b1_ref[...])
    h = jnp.maximum(h, 0.0)                       # VPU epilogue, free under MXU
    logits = (jnp.dot(h.astype(w2_ref.dtype), w2_ref[...],
                      preferred_element_type=jnp.float32)
              + b2_ref[...])
    o_ref[...] = logits.astype(o_ref.dtype)


def _inverse_dynamics_kernel_split(s_ref, ns_ref, w1a_ref, w1b_ref, b1_ref,
                                   w2_ref, b2_ref, o_ref):
    # cat(s, ns) @ W1 == s @ W1[:128] + ns @ W1[128:].  K=128 is the exact depth
    # of v5e's 128-deep MXU, so no in-VMEM concat is needed there.
    s = s_ref[...].astype(w1a_ref.dtype)
    ns = ns_ref[...].astype(w1b_ref.dtype)
    h = (jnp.dot(s, w1a_ref[...], preferred_element_type=jnp.float32)
         + jnp.dot(ns, w1b_ref[...], preferred_element_type=jnp.float32)
         + b1_ref[...])
    h = jnp.maximum(h, 0.0)
    logits = (jnp.dot(h.astype(w2_ref.dtype), w2_ref[...],
                      preferred_element_type=jnp.float32)
              + b2_ref[...])
    o_ref[...] = logits.astype(o_ref.dtype)


# ------------------------------- wrapper --------------------------------------

def _device_kind():
    try:
        return jax.devices()[0].device_kind.lower()
    except Exception:
        return ""


def inverse_dynamics_forward(state_embedding, next_state_embedding, prepared,
                             *, tm=512, fuse_k256=None, num_parallel_cores=None):
    """state/next_state: (T, B, 128) f32 -> action logits (T, B, num_actions) f32."""
    T, B, D = state_embedding.shape
    assert D == 128 and next_state_embedding.shape == (T, B, D)
    A = prepared["num_actions"]
    A_pad = prepared["w2p"].shape[1]
    compute_dtype = prepared["compute_dtype"]

    kind = _device_kind()
    if fuse_k256 is None:
        # v6e/v7x MXUs are 256 deep -> single K=256 matmul; v5e MXU is 128 deep,
        # so the K=128 split is already the perfect depth fit there.
        fuse_k256 = "v5" not in kind
    if num_parallel_cores is None:
        num_parallel_cores = 2 if "v7" in kind else 1

    M = T * B
    s2 = state_embedding.reshape(M, D)
    n2 = next_state_embedding.reshape(M, D)

    # Adaptive row tile: large tile for big M (HBM roofline), shrink for tiny M,
    # and cap so v7x's two TensorCores both get grid steps when M >= 64.
    tm_eff = min(tm, pl.cdiv(M, 8) * 8)                      # multiple of 8 (sublane)
    if num_parallel_cores > 1 and M >= 64:
        tm_eff = min(tm_eff, pl.cdiv(pl.cdiv(M, num_parallel_cores), 8) * 8)
    grid = (pl.cdiv(M, tm_eff),)   # partial last block handled by Pallas (no jnp.pad)

    row_spec = pl.BlockSpec((tm_eff, D), lambda i: (i, 0))

    def full_spec(a):
        return pl.BlockSpec(a.shape, lambda i: (0, 0))       # weights resident in VMEM

    out_spec = pl.BlockSpec((tm_eff, A_pad), lambda i: (i, 0))
    out_shape = jax.ShapeDtypeStruct((M, A_pad), jnp.float32)
    cparams = pltpu.CompilerParams(
        dimension_semantics=("parallel",),   # shard row tiles across v7x's 2 TCs
        vmem_limit_bytes=32 << 20,           # under v7x's 64 MiB physical VMEM
    )

    if fuse_k256:
        out = pl.pallas_call(
            _inverse_dynamics_kernel_fused,
            out_shape=out_shape,
            grid_spec=pltpu.PrefetchScalarGridSpec(
                num_scalar_prefetch=0,
                grid=grid,
                in_specs=[row_spec, row_spec,
                          full_spec(prepared["w1"]), full_spec(prepared["b1"]),
                          full_spec(prepared["w2p"]), full_spec(prepared["b2p"])],
                out_specs=out_spec,
                scratch_shapes=[pltpu.VMEM((tm_eff, 2 * D), compute_dtype)],
            ),
            compiler_params=cparams,
        )(s2, n2, prepared["w1"], prepared["b1"], prepared["w2p"], prepared["b2p"])
    else:
        out = pl.pallas_call(
            _inverse_dynamics_kernel_split,
            out_shape=out_shape,
            grid_spec=pltpu.PrefetchScalarGridSpec(
                num_scalar_prefetch=0,
                grid=grid,
                in_specs=[row_spec, row_spec,
                          full_spec(prepared["w1a"]), full_spec(prepared["w1b"]),
                          full_spec(prepared["b1"]),
                          full_spec(prepared["w2p"]), full_spec(prepared["b2p"])],
                out_specs=out_spec,
            ),
            compiler_params=cparams,
        )(s2, n2, prepared["w1a"], prepared["w1b"], prepared["b1"],
          prepared["w2p"], prepared["b2p"])

    return out[:, :A].reshape(T, B, A)


# ------------------------------ reference ------------------------------------

def inverse_dynamics_reference(state_embedding, next_state_embedding, params):
    w1, b1, w2, b2 = params
    x = jnp.concatenate([state_embedding, next_state_embedding], axis=2)   # (T,B,256)
    h = jnp.maximum(jnp.einsum('tbi,io->tbo', x, w1) + b1, 0.0)
    return jnp.einsum('tbi,io->tbo', h, w2) + b2


# --------------------------------- main --------------------------------------

if __name__ == "__main__":
    num_actions = 7
    T, B, D = 4, 8, 128

    key = jax.random.PRNGKey(0)
    k1, k2 = jax.random.split(key)
    state_emb = jax.random.normal(k1, (T, B, D), dtype=jnp.float32)
    next_state_emb = jax.random.normal(k2, (T, B, D), dtype=jnp.float32)

    params = make_params(num_actions, seed=0)
    prepared = prepare_params(params)          # one-time weight prep (init-time)

    y = inverse_dynamics_forward(state_emb, next_state_emb, prepared)
    y = jax.block_until_ready(y)

    y_ref = inverse_dynamics_reference(state_emb, next_state_emb, params)
    assert y.shape == (T, B, num_actions)
    assert jnp.allclose(y, y_ref, atol=1e-4, rtol=1e-4), "mismatch vs reference"

    print("KERNEL_OK")
</pallas_src>

<mosaic_0001>
module attributes {stable_mosaic.version = 11 : i64} {
  func.func @_inverse_dynamics_kernel_fused(%arg0: i32, %arg1: memref<32x128xf32, #tpu.memory_space<vmem>>, %arg2: memref<32x128xf32, #tpu.memory_space<vmem>>, %arg3: memref<256x256xf32, #tpu.memory_space<vmem>>, %arg4: memref<1x256xf32, #tpu.memory_space<vmem>>, %arg5: memref<256x128xf32, #tpu.memory_space<vmem>>, %arg6: memref<1x128xf32, #tpu.memory_space<vmem>>, %arg7: memref<32x128xf32, #tpu.memory_space<vmem>>, %arg8: memref<32x256xf32, #tpu.memory_space<vmem>>) attributes {dimension_semantics = [#tpu.dimension_semantics<parallel>], iteration_bounds = array<i64: 1>, scalar_prefetch = 0 : i64, scratch_operands = 1 : i64, tpu.core_type = #tpu.core_type<tc>, window_params = [{transform_indices = @transform_0, window_bounds = array<i64: 32, 128>}, {transform_indices = @transform_1, window_bounds = array<i64: 32, 128>}, {pipeline_mode = #tpu.pipeline_mode<synchronous>, transform_indices = @transform_2, window_bounds = array<i64: 256, 256>}, {pipeline_mode = #tpu.pipeline_mode<synchronous>, transform_indices = @transform_3, window_bounds = array<i64: 1, 256>}, {pipeline_mode = #tpu.pipeline_mode<synchronous>, transform_indices = @transform_4, window_bounds = array<i64: 256, 128>}, {pipeline_mode = #tpu.pipeline_mode<synchronous>, transform_indices = @transform_5, window_bounds = array<i64: 1, 128>}, {transform_indices = @transform_6, window_bounds = array<i64: 32, 128>}]} {
    %c0 = arith.constant 0 : index
    %c0_0 = arith.constant 0 : index
    %0 = vector.load %arg1[%c0, %c0_0] : memref<32x128xf32, #tpu.memory_space<vmem>>, vector<32x128xf32>
    %c0_1 = arith.constant 0 : index
    %c0_2 = arith.constant 0 : index
    %1 = vector.load %arg8[%c0_1, %c0_2] : memref<32x256xf32, #tpu.memory_space<vmem>>, vector<32x128xf32>
    tpu.vector_store %arg8[%c0_1, %c0_2], %0 {strides = array<i32>} : memref<32x256xf32, #tpu.memory_space<vmem>>, vector<32x128xf32>,
    %c0_3 = arith.constant 0 : index
    %c0_4 = arith.constant 0 : index
    %2 = vector.load %arg2[%c0_3, %c0_4] : memref<32x128xf32, #tpu.memory_space<vmem>>, vector<32x128xf32>
    %c0_5 = arith.constant 0 : index
    %c128 = arith.constant 128 : index
    %3 = vector.load %arg8[%c0_5, %c128] : memref<32x256xf32, #tpu.memory_space<vmem>>, vector<32x128xf32>
    tpu.vector_store %arg8[%c0_5, %c128], %2 {strides = array<i32>} : memref<32x256xf32, #tpu.memory_space<vmem>>, vector<32x128xf32>,
    %c0_6 = arith.constant 0 : index
    %c0_7 = arith.constant 0 : index
    %4 = vector.load %arg8[%c0_6, %c0_7] : memref<32x256xf32, #tpu.memory_space<vmem>>, vector<32x256xf32>
    %c0_8 = arith.constant 0 : index
    %c0_9 = arith.constant 0 : index
    %5 = vector.load %arg3[%c0_8, %c0_9] : memref<256x256xf32, #tpu.memory_space<vmem>>, vector<256x256xf32>
    %cst = arith.constant dense<0.000000e+00> : vector<32x256xf32>
    %6 = tpu.matmul %4, %5, %cst {dimension_numbers = #tpu.dot_dimension_numbers<[1], [0], [0], [1], [0, 0, 1, 1], [], []>} : vector<32x256xf32>, vector<256x256xf32>, vector<32x256xf32> -> vector<32x256xf32>
    %c0_10 = arith.constant 0 : index
    %c0_11 = arith.constant 0 : index
    %7 = vector.load %arg4[%c0_10, %c0_11] : memref<1x256xf32, #tpu.memory_space<vmem>>, vector<1x256xf32>
    %8 = vector.broadcast %7 : vector<1x256xf32> to vector<32x256xf32>
    %9 = arith.addf %6, %8 : vector<32x256xf32>
    %cst_12 = arith.constant 0.000000e+00 : f32
    %10 = vector.broadcast %cst_12 : f32 to vector<32x256xf32>
    %11 = arith.maximumf %9, %10 : vector<32x256xf32>
    %c0_13 = arith.constant 0 : index
    %c0_14 = arith.constant 0 : index
    %12 = vector.load %arg5[%c0_13, %c0_14] : memref<256x128xf32, #tpu.memory_space<vmem>>, vector<256x128xf32>
    %cst_15 = arith.constant dense<0.000000e+00> : vector<32x128xf32>
    %13 = tpu.matmul %11, %12, %cst_15 {dimension_numbers = #tpu.dot_dimension_numbers<[1], [0], [0], [1], [0, 0, 1, 1], [], []>} : vector<32x256xf32>, vector<256x128xf32>, vector<32x128xf32> -> vector<32x128xf32>
    %c0_16 = arith.constant 0 : index
    %c0_17 = arith.constant 0 : index
    %14 = vector.load %arg6[%c0_16, %c0_17] : memref<1x128xf32, #tpu.memory_space<vmem>>, vector<1x128xf32>
    %15 = vector.broadcast %14 : vector<1x128xf32> to vector<32x128xf32>
    %16 = arith.addf %13, %15 : vector<32x128xf32>
    %c0_18 = arith.constant 0 : index
    %c0_19 = arith.constant 0 : index
    %17 = vector.load %arg7[%c0_18, %c0_19] : memref<32x128xf32, #tpu.memory_space<vmem>>, vector<32x128xf32>
    tpu.vector_store %arg7[%c0_18, %c0_19], %16 {strides = array<i32>} : memref<32x128xf32, #tpu.memory_space<vmem>>, vector<32x128xf32>,
    return
  }
  func.func @transform_0(%arg0: i32) -> (i32, i32) {
    %c0_i32 = arith.constant 0 : i32
    %c0_i32_0 = arith.constant 0 : i32
    return %arg0, %c0_i32 : i32, i32
  }
  func.func @transform_1(%arg0: i32) -> (i32, i32) {
    %c0_i32 = arith.constant 0 : i32
    %c0_i32_0 = arith.constant 0 : i32
    return %arg0, %c0_i32 : i32, i32
  }
  func.func @transform_2(%arg0: i32) -> (i32, i32) {
    %c0_i32 = arith.constant 0 : i32
    %c0_i32_0 = arith.constant 0 : i32
    %c0_i32_1 = arith.constant 0 : i32
    return %c0_i32, %c0_i32_0 : i32, i32
  }
  func.func @transform_3(%arg0: i32) -> (i32, i32) {
    %c0_i32 = arith.constant 0 : i32
    %c0_i32_0 = arith.constant 0 : i32
    %c0_i32_1 = arith.constant 0 : i32
    return %c0_i32, %c0_i32_0 : i32, i32
  }
  func.func @transform_4(%arg0: i32) -> (i32, i32) {
    %c0_i32 = arith.constant 0 : i32
    %c0_i32_0 = arith.constant 0 : i32
    %c0_i32_1 = arith.constant 0 : i32
    return %c0_i32, %c0_i32_0 : i32, i32
  }
  func.func @transform_5(%arg0: i32) -> (i32, i32) {
    %c0_i32 = arith.constant 0 : i32
    %c0_i32_0 = arith.constant 0 : i32
    %c0_i32_1 = arith.constant 0 : i32
    return %c0_i32, %c0_i32_0 : i32, i32
  }
  func.func @transform_6(%arg0: i32) -> (i32, i32) {
    %c0_i32 = arith.constant 0 : i32
    %c0_i32_0 = arith.constant 0 : i32
    return %arg0, %c0_i32 : i32, i32
  }
}

</mosaic_0001>

<llo_original>
// kernel: tpu_custom_call.1
$region0: #{tpu_custom_call.1}
  #allocation0 [shape = 'u32[]', space=smem, size = 0x4, offset = 0x4, fixed_abs, tag = 'smem constant byte address 0x4 - core index']
  #allocation1 [shape = 'u32[144,128]{1,0:T(1,128)}', space=vmem, size = 0x12000, scoped, tag = 'internal scratch']
  #allocation2 [shape = 'f32[32,256]{1,0:T(8,128)}', space=vmem, size = 0x8000, scoped, tag = 'scratch operand']
  %s0 = inlined_call_operand.hbm [shape: f32[32,128], index: 0, kind: input, shape index: {}]
  %s1 = inlined_call_operand.hbm [shape: f32[32,128], index: 1, kind: input, shape index: {}]
  %s2 = inlined_call_operand.hbm [shape: f32[256,256], index: 2, kind: input, shape index: {}]
  %s3 = inlined_call_operand.vmem [shape: f32[1,256], index: 3, kind: input, shape index: {}]
  %s4 = inlined_call_operand.hbm [shape: f32[256,128], index: 4, kind: input, shape index: {}]
  %s5 = inlined_call_operand.vmem [shape: f32[1,128], index: 5, kind: input, shape index: {}]
  %s6 = inlined_call_operand.hbm [shape: f32[32,128], index: 6, kind: output, shape index: {}]
  %s7 = sld [smem:[#allocation0]]
  $region50: #{tpu_custom_call.1} parent=0
    _
  %s9 = ssub.s32 1, %s7
  %s10 = scalar_select 0, %s9, %s7
  $region1: #{tpu_custom_call.1} parent=0
    #allocation3 [shape = 'u8[16384]{0}', space=vmem, size = 0x4000, scoped, tag = 'input window, operand 0, single buffered']
    #allocation4 [shape = 's32[1]{0}', space=sflag, size = 0x4, scoped, tag = 'scoped memory for tpu_custom_call.1']
    #allocation5 [shape = 's32[1]{0}', space=sflag, size = 0x4, scoped, tag = 'scoped memory for tpu_custom_call.1']
    #allocation6 [shape = 'u8[16384]{0}', space=vmem, size = 0x4000, scoped, tag = 'input window, operand 1, single buffered']
    #allocation7 [shape = 's32[1]{0}', space=sflag, size = 0x4, scoped, tag = 'scoped memory for tpu_custom_call.1']
    #allocation8 [shape = 'u8[262144]{0}', space=vmem, size = 0x40000, scoped, tag = 'input window, operand 2, single buffered']
    #allocation9 [shape = 'u8[131072]{0}', space=vmem, size = 0x20000, scoped, tag = 'input window, operand 4, single buffered']
    #allocation10 [shape = 's32[1]{0}', space=sflag, size = 0x4, scoped, tag = 'scoped memory for tpu_custom_call.1']
    #allocation11 [shape = 'u8[16384]{0}', space=vmem, size = 0x4000, scoped, tag = 'output window, operand 0, single buffered']
    %11 = vsyncpa [#allocation4], 0
    %12 = vsyncpa [#allocation7], 0
    %13 = vsyncpa [#allocation10], 0
    %14 = vsyncpa [#allocation5], 0
    // Predicated region
    $region2: #{tpu_custom_call.1} parent=1 // pred_check
      _
    $region3: #{tpu_custom_call.1} parent=1 // pred_check_branch
      %16 = sbr.rel (0) target = $region5
    $region4: #{tpu_custom_call.1} parent=1 // pred_region
      %s18 = ssub.s32 512, 512
      %19 = vsyncadd [#allocation4], %s18
      %s20 = sshll.u32 [#allocation3], 4
      %s21 = int_to_ptr.vmem [resolvable:$true] %s20
      %26 = dma.hbm_to_vmem [thread:$0]  %s0, 512, %s21, [#allocation4], 128, 128, 8
    $region5: #{tpu_custom_call.1} parent=1 // pred_fallthru
      _
    // Predicated region
    $region6: #{tpu_custom_call.1} parent=1 // pred_check
      _
    $region7: #{tpu_custom_call.1} parent=1 // pred_check_branch
      %28 = sbr.rel (0) target = $region9
    $region8: #{tpu_custom_call.1} parent=1 // pred_region
      %s30 = ssub.s32 512, 512
      %31 = vsyncadd [#allocation7], %s30
      %s32 = sshll.u32 [#allocation6], 4
      %s33 = int_to_ptr.vmem [resolvable:$true] %s32
      %38 = dma.hbm_to_vmem [thread:$0]  %s1, 512, %s33, [#allocation7], 128, 128, 8
    $region9: #{tpu_custom_call.1} parent=1 // pred_fallthru
      _
    // Predicated region
    $region10: #{tpu_custom_call.1} parent=1 // pred_check
      _
    $region11: #{tpu_custom_call.1} parent=1 // pred_check_branch
      %40 = sbr.rel (0) target = $region13
    $region12: #{tpu_custom_call.1} parent=1 // pred_region
      %s42 = ssub.s32 8192, 8192
      %43 = vsyncadd [#allocation7], %s42
      %s44 = sshll.u32 [#allocation8], 4
      %s45 = int_to_ptr.vmem [resolvable:$true] %s44
      %50 = dma.hbm_to_vmem [thread:$0]  %s2, 8192, %s45, [#allocation7], 256, 256, 16
    $region13: #{tpu_custom_call.1} parent=1 // pred_fallthru
      _
    // Predicated region
    $region14: #{tpu_custom_call.1} parent=1 // pred_check
      _
    $region15: #{tpu_custom_call.1} parent=1 // pred_check_branch
      %52 = sbr.rel (0) target = $region17
    $region16: #{tpu_custom_call.1} parent=1 // pred_region
      _
    $region17: #{tpu_custom_call.1} parent=1 // pred_fallthru
      _
    // Predicated region
    $region18: #{tpu_custom_call.1} parent=1 // pred_check
      _
    $region19: #{tpu_custom_call.1} parent=1 // pred_check_branch
      %54 = sbr.rel (0) target = $region21
    $region20: #{tpu_custom_call.1} parent=1 // pred_region
      %s56 = ssub.s32 4096, 4096
      %57 = vsyncadd [#allocation10], %s56
      %s58 = sshll.u32 [#allocation9], 4
      %s59 = int_to_ptr.vmem [resolvable:$true] %s58
      %64 = dma.hbm_to_vmem [thread:$0]  %s4, 4096, %s59, [#allocation10], 128, 128, 8
    $region21: #{tpu_custom_call.1} parent=1 // pred_fallthru
      _
    // Predicated region
    $region22: #{tpu_custom_call.1} parent=1 // pred_check
      _
    $region23: #{tpu_custom_call.1} parent=1 // pred_check_branch
      %66 = sbr.rel (0) target = $region25
    $region24: #{tpu_custom_call.1} parent=1 // pred_region
      _
    $region25: #{tpu_custom_call.1} parent=1 // pred_fallthru
      _
    // Predicated region
    $region26: #{tpu_custom_call.1} parent=1 // pred_check
      _
    $region27: #{tpu_custom_call.1} parent=1 // pred_check_branch
      %68 = sbr.rel (0) target = $region29
    $region28: #{tpu_custom_call.1} parent=1 // pred_region
      %69 = dma.done [#allocation4], 512
    $region29: #{tpu_custom_call.1} parent=1 // pred_fallthru
      _
    // Predicated region
    $region30: #{tpu_custom_call.1} parent=1 // pred_check
      _
    $region31: #{tpu_custom_call.1} parent=1 // pred_check_branch
      %71 = sbr.rel (0) target = $region33
    $region32: #{tpu_custom_call.1} parent=1 // pred_region
      %72 = dma.done [#allocation7], 512
    $region33: #{tpu_custom_call.1} parent=1 // pred_fallthru
      _
    // Predicated region
    $region34: #{tpu_custom_call.1} parent=1 // pred_check
      _
    $region35: #{tpu_custom_call.1} parent=1 // pred_check_branch
      %74 = sbr.rel (0) target = $region37
    $region36: #{tpu_custom_call.1} parent=1 // pred_region
      %75 = dma.done [#allocation7], 8192
    $region37: #{tpu_custom_call.1} parent=1 // pred_fallthru
      _
    // Predicated region
    $region38: #{tpu_custom_call.1} parent=1 // pred_check
      _
    $region39: #{tpu_custom_call.1} parent=1 // pred_check_branch
      %77 = sbr.rel (0) target = $region41
    $region40: #{tpu_custom_call.1} parent=1 // pred_region
      %78 = dma.done [#allocation10], 4096
    $region41: #{tpu_custom_call.1} parent=1 // pred_fallthru
      _
    %v79 = vld [vmem:[#allocation3] sm:$0xff]
    %v80 = vld [vmem:[#allocation3 + $0x8] sm:$0xff]
    %v81 = vld [vmem:[#allocation3 + $0x10] sm:$0xff]
    %v82 = vld [vmem:[#allocation3 + $0x18] sm:$0xff]
    %83 = vst [vmem:[#allocation2] sm:$0xff] %v79
    %84 = vst [vmem:[#allocation2 + $0x10] sm:$0xff] %v80
    %85 = vst [vmem:[#allocation2 + $0x20] sm:$0xff] %v81
    %86 = vst [vmem:[#allocation2 + $0x30] sm:$0xff] %v82
    %v87 = vld [vmem:[#allocation6] sm:$0xff]
    %v88 = vld [vmem:[#allocation6 + $0x8] sm:$0xff]
    %v89 = vld [vmem:[#allocation6 + $0x10] sm:$0xff]
    %v90 = vld [vmem:[#allocation6 + $0x18] sm:$0xff]
    %91 = vst [vmem:[#allocation2 + $0x8] sm:$0xff] %v87
    %92 = vst [vmem:[#allocation2 + $0x18] sm:$0xff] %v88
    %93 = vst [vmem:[#allocation2 + $0x28] sm:$0xff] %v89
    %94 = vst [vmem:[#allocation2 + $0x38] sm:$0xff] %v90
    %v95 = vld [vmem:[#allocation2] sm:$0xff]
    %v96 = vld [vmem:[#allocation2 + $0x8] sm:$0xff]
    %v97 = vld [vmem:[#allocation2 + $0x10] sm:$0xff]
    %v98 = vld [vmem:[#allocation2 + $0x18] sm:$0xff]
    %v99 = vld [vmem:[#allocation2 + $0x20] sm:$0xff]
    %v100 = vld [vmem:[#allocation2 + $0x28] sm:$0xff]
    %v101 = vld [vmem:[#allocation2 + $0x30] sm:$0xff]
    %v102 = vld [vmem:[#allocation2 + $0x38] sm:$0xff]
    %v103 = vld [vmem:[#allocation8] sm:$0xff]
    %v104 = vld [vmem:[#allocation8 + $0x8] sm:$0xff]
    %v105 = vld [vmem:[#allocation8 + $0x10] sm:$0xff]
    %v106 = vld [vmem:[#allocation8 + $0x18] sm:$0xff]
    %v107 = vld [vmem:[#allocation8 + $0x20] sm:$0xff]
    %v108 = vld [vmem:[#allocation8 + $0x28] sm:$0xff]
    %v109 = vld [vmem:[#allocation8 + $0x30] sm:$0xff]
    %v110 = vld [vmem:[#allocation8 + $0x38] sm:$0xff]
    %v111 = vld [vmem:[#allocation8 + $0x40] sm:$0xff]
    %v112 = vld [vmem:[#allocation8 + $0x48] sm:$0xff]
    %v113 = vld [vmem:[#allocation8 + $0x50] sm:$0xff]
    %v114 = vld [vmem:[#allocation8 + $0x58] sm:$0xff]
    %v115 = vld [vmem:[#allocation8 + $0x60] sm:$0xff]
    %v116 = vld [vmem:[#allocation8 + $0x68] sm:$0xff]
    %v117 = vld [vmem:[#allocation8 + $0x70] sm:$0xff]
    %v118 = vld [vmem:[#allocation8 + $0x78] sm:$0xff]
    %v119 = vld [vmem:[#allocation8 + $0x80] sm:$0xff]
    %v120 = vld [vmem:[#allocation8 + $0x88] sm:$0xff]
    %v121 = vld [vmem:[#allocation8 + $0x90] sm:$0xff]
    %v122 = vld [vmem:[#allocation8 + $0x98] sm:$0xff]
    %v123 = vld [vmem:[#allocation8 + $0xa0] sm:$0xff]
    %v124 = vld [vmem:[#allocation8 + $0xa8] sm:$0xff]
    %v125 = vld [vmem:[#allocation8 + $0xb0] sm:$0xff]
    %v126 = vld [vmem:[#allocation8 + $0xb8] sm:$0xff]
    %v127 = vld [vmem:[#allocation8 + $0xc0] sm:$0xff]
    %v128 = vld [vmem:[#allocation8 + $0xc8] sm:$0xff]
    %v129 = vld [vmem:[#allocation8 + $0xd0] sm:$0xff]
    %v130 = vld [vmem:[#allocation8 + $0xd8] sm:$0xff]
    %v131 = vld [vmem:[#allocation8 + $0xe0] sm:$0xff]
    %v132 = vld [vmem:[#allocation8 + $0xe8] sm:$0xff]
    %v133 = vld [vmem:[#allocation8 + $0xf0] sm:$0xff]
    %v134 = vld [vmem:[#allocation8 + $0xf8] sm:$0xff]
    %v135 = vld [vmem:[#allocation8 + $0x100] sm:$0xff]
    %v136 = vld [vmem:[#allocation8 + $0x108] sm:$0xff]
    %v137 = vld [vmem:[#allocation8 + $0x110] sm:$0xff]
    %v138 = vld [vmem:[#allocation8 + $0x118] sm:$0xff]
    %v139 = vld [vmem:[#allocation8 + $0x120] sm:$0xff]
    %v140 = vld [vmem:[#allocation8 + $0x128] sm:$0xff]
    %v141 = vld [vmem:[#allocation8 + $0x130] sm:$0xff]
    %v142 = vld [vmem:[#allocation8 + $0x138] sm:$0xff]
    %v143 = vld [vmem:[#allocation8 + $0x140] sm:$0xff]
    %v144 = vld [vmem:[#allocation8 + $0x148] sm:$0xff]
    %v145 = vld [vmem:[#allocation8 + $0x150] sm:$0xff]
    %v146 = vld [vmem:[#allocation8 + $0x158] sm:$0xff]
    %v147 = vld [vmem:[#allocation8 + $0x160] sm:$0xff]
    %v148 = vld [vmem:[#allocation8 + $0x168] sm:$0xff]
    %v149 = vld [vmem:[#allocation8 + $0x170] sm:$0xff]
    %v150 = vld [vmem:[#allocation8 + $0x178] sm:$0xff]
    %v151 = vld [vmem:[#allocation8 + $0x180] sm:$0xff]
    %v152 = vld [vmem:[#allocation8 + $0x188] sm:$0xff]
    %v153 = vld [vmem:[#allocation8 + $0x190] sm:$0xff]
    %v154 = vld [vmem:[#allocation8 + $0x198] sm:$0xff]
    %v155 = vld [vmem:[#allocation8 + $0x1a0] sm:$0xff]
    %v156 = vld [vmem:[#allocation8 + $0x1a8] sm:$0xff]
    %v157 = vld [vmem:[#allocation8 + $0x1b0] sm:$0xff]
    %v158 = vld [vmem:[#allocation8 + $0x1b8] sm:$0xff]
    %v159 = vld [vmem:[#allocation8 + $0x1c0] sm:$0xff]
    %v160 = vld [vmem:[#allocation8 + $0x1c8] sm:$0xff]
    %v161 = vld [vmem:[#allocation8 + $0x1d0] sm:$0xff]
    %v162 = vld [vmem:[#allocation8 + $0x1d8] sm:$0xff]
    %v163 = vld [vmem:[#allocation8 + $0x1e0] sm:$0xff]
    %v164 = vld [vmem:[#allocation8 + $0x1e8] sm:$0xff]
    %v165 = vld [vmem:[#allocation8 + $0x1f0] sm:$0xff]
    %v166 = vld [vmem:[#allocation8 + $0x1f8] sm:$0xff]
    %v167 = vld [vmem:[%s3] sm:$0x3]
    %v169 = vlaneseq
    %v170 = vshrl.u32 %v169, 7
    %v171 = vsub.s32 0, %v170
    %v172 = vrot.slane %v167, %v171
    %v173 = vlaneseq
    %v174 = vshrl.u32 %v173, 7
    %v175 = vsub.s32 1, %v174
    %v176 = vrot.slane %v167, %v175
    %179 = vmatprep.subr.mxu0 %v104
    %180 = vmatpush1.msra.mxu0 %v103
    %181 = vmatprep.subr.mxu0 %v106
    %182 = vmatpush1.msra.mxu0 %v105
    %183 = vmatprep.subr.mxu0 %v108
    %184 = vmatpush1.msra.mxu0 %v107
    %185 = vmatprep.subr.mxu0 %v110
    %186 = vmatpush1.msra.mxu0 %v109
    %187 = vmatprep.subr.mxu0 %v112
    %188 = vmatpush1.msra.mxu0 %v111
    %189 = vmatprep.subr.mxu0 %v114
    %190 = vmatpush1.msra.mxu0 %v113
    %191 = vmatprep.subr.mxu0 %v116
    %192 = vmatpush1.msra.mxu0 %v115
    %193 = vmatprep.subr.mxu0 %v118
    %194 = vmatpush1.msra.mxu0 %v117
    %195 = vmatprep.subr.mxu0 %v120
    %196 = vmatpush1.msra.mxu0 %v119
    %197 = vmatprep.subr.mxu0 %v122
    %198 = vmatpush1.msra.mxu0 %v121
    %199 = vmatprep.subr.mxu0 %v124
    %200 = vmatpush1.msra.mxu0 %v123
    %201 = vmatprep.subr.mxu0 %v126
    %202 = vmatpush1.msra.mxu0 %v125
    %203 = vmatprep.subr.mxu0 %v128
    %204 = vmatpush1.msra.mxu0 %v127
    %205 = vmatprep.subr.mxu0 %v130
    %206 = vmatpush1.msra.mxu0 %v129
    %207 = vmatprep.subr.mxu0 %v132
    %208 = vmatpush1.msra.mxu0 %v131
    %209 = vmatprep.subr.mxu0 %v134
    %210 = vmatpush1.msra.mxu0 %v133
    %211 = vmatprep.subr.mxu0 %v136
    %212 = vmatpush1.msra.mxu0 %v135
    %213 = vmatprep.subr.mxu0 %v138
    %214 = vmatpush1.msra.mxu0 %v137
    %215 = vmatprep.subr.mxu0 %v140
    %216 = vmatpush1.msra.mxu0 %v139
    %217 = vmatprep.subr.mxu0 %v142
    %218 = vmatpush1.msra.mxu0 %v141
    %219 = vmatprep.subr.mxu0 %v144
    %220 = vmatpush1.msra.mxu0 %v143
    %221 = vmatprep.subr.mxu0 %v146
    %222 = vmatpush1.msra.mxu0 %v145
    %223 = vmatprep.subr.mxu0 %v148
    %224 = vmatpush1.msra.mxu0 %v147
    %225 = vmatprep.subr.mxu0 %v150
    %226 = vmatpush1.msra.mxu0 %v149
    %227 = vmatprep.subr.mxu0 %v152
    %228 = vmatpush1.msra.mxu0 %v151
    %229 = vmatprep.subr.mxu0 %v154
    %230 = vmatpush1.msra.mxu0 %v153
    %231 = vmatprep.subr.mxu0 %v156
    %232 = vmatpush1.msra.mxu0 %v155
    %233 = vmatprep.subr.mxu0 %v158
    %234 = vmatpush1.msra.mxu0 %v157
    %235 = vmatprep.subr.mxu0 %v160
    %236 = vmatpush1.msra.mxu0 %v159
    %237 = vmatprep.subr.mxu0 %v162
    %238 = vmatpush1.msra.mxu0 %v161
    %239 = vmatprep.subr.mxu0 %v164
    %240 = vmatpush1.msra.mxu0 %v163
    %241 = vmatprep.subr.mxu0 %v166
    %242 = vmatpush1.msra.mxu0 %v165
    %243 = vmatprep.mubr.f32.mxu0 %v96
    %244 = vmatmul.mubr.f32.gmra.mrb[0].mxu0 %v95
    %v245 = vpop.f32.mrb[0].mxu0
    %v246 = vadd.f32 %v172, %v245
    %v247 = vpop.f32.mrb[0].mxu0
    %v248 = vadd.f32 %v176, %v247
    %249 = vmatprep.mubr.f32.mxu0 %v98
    %250 = vmatmul.mubr.f32.gmra.mrb[0].mxu0 %v97
    %v251 = vpop.f32.mrb[0].mxu0
    %v252 = vadd.f32 %v172, %v251
    %v253 = vpop.f32.mrb[0].mxu0
    %v254 = vadd.f32 %v176, %v253
    %255 = vmatprep.mubr.f32.mxu0 %v100
    %256 = vmatmul.mubr.f32.gmra.mrb[0].mxu0 %v99
    %v257 = vpop.f32.mrb[0].mxu0
    %v258 = vadd.f32 %v172, %v257
    %v259 = vpop.f32.mrb[0].mxu0
    %v260 = vadd.f32 %v176, %v259
    %261 = vmatprep.mubr.f32.mxu0 %v102
    %262 = vmatmul.mubr.f32.gmra.mrb[0].mxu0 %v101
    %v263 = vpop.f32.mrb[0].mxu0
    %v264 = vadd.f32 %v172, %v263
    %v265 = vpop.f32.mrb[0].mxu0
    %v266 = vadd.f32 %v176, %v265
    %267 = vdwg.mxu0
    %v268 = vmax.f32 %v246, 0.0
    %v269 = vmax.f32 %v248, 0.0
    %v270 = vmax.f32 %v252, 0.0
    %v271 = vmax.f32 %v254, 0.0
    %v272 = vmax.f32 %v258, 0.0
    %v273 = vmax.f32 %v260, 0.0
    %v274 = vmax.f32 %v264, 0.0
    %v275 = vmax.f32 %v266, 0.0
    %v276 = vld [vmem:[#allocation9] sm:$0xff]
    %v277 = vld [vmem:[#allocation9 + $0x8] sm:$0xff]
    %v278 = vld [vmem:[#allocation9 + $0x10] sm:$0xff]
    %v279 = vld [vmem:[#allocation9 + $0x18] sm:$0xff]
    %v280 = vld [vmem:[#allocation9 + $0x20] sm:$0xff]
    %v281 = vld [vmem:[#allocation9 + $0x28] sm:$0xff]
    %v282 = vld [vmem:[#allocation9 + $0x30] sm:$0xff]
    %v283 = vld [vmem:[#allocation9 + $0x38] sm:$0xff]
    %v284 = vld [vmem:[#allocation9 + $0x40] sm:$0xff]
    %v285 = vld [vmem:[#allocation9 + $0x48] sm:$0xff]
    %v286 = vld [vmem:[#allocation9 + $0x50] sm:$0xff]
    %v287 = vld [vmem:[#allocation9 + $0x58] sm:$0xff]
    %v288 = vld [vmem:[#allocation9 + $0x60] sm:$0xff]
    %v289 = vld [vmem:[#allocation9 + $0x68] sm:$0xff]
    %v290 = vld [vmem:[#allocation9 + $0x70] sm:$0xff]
    %v291 = vld [vmem:[#allocation9 + $0x78] sm:$0xff]
    %v292 = vld [vmem:[#allocation9 + $0x80] sm:$0xff]
    %v293 = vld [vmem:[#allocation9 + $0x88] sm:$0xff]
    %v294 = vld [vmem:[#allocation9 + $0x90] sm:$0xff]
    %v295 = vld [vmem:[#allocation9 + $0x98] sm:$0xff]
    %v296 = vld [vmem:[#allocation9 + $0xa0] sm:$0xff]
    %v297 = vld [vmem:[#allocation9 + $0xa8] sm:$0xff]
    %v298 = vld [vmem:[#allocation9 + $0xb0] sm:$0xff]
    %v299 = vld [vmem:[#allocation9 + $0xb8] sm:$0xff]
    %v300 = vld [vmem:[#allocation9 + $0xc0] sm:$0xff]
    %v301 = vld [vmem:[#allocation9 + $0xc8] sm:$0xff]
    %v302 = vld [vmem:[#allocation9 + $0xd0] sm:$0xff]
    %v303 = vld [vmem:[#allocation9 + $0xd8] sm:$0xff]
    %v304 = vld [vmem:[#allocation9 + $0xe0] sm:$0xff]
    %v305 = vld [vmem:[#allocation9 + $0xe8] sm:$0xff]
    %v306 = vld [vmem:[#allocation9 + $0xf0] sm:$0xff]
    %v307 = vld [vmem:[#allocation9 + $0xf8] sm:$0xff]
    %v308 = vld [vmem:[%s5] sm:$0x1]
    %v310 = vlaneseq
    %v311 = vshrl.u32 %v310, 7
    %v312 = vsub.s32 0, %v311
    %v313 = vrot.slane %v308, %v312
    %315 = vmatprep.subr.mxu0 0.0
    %316 = vmatpush1.msra.mxu0 %v276
    %317 = vmatprep.subr.mxu0 0.0
    %318 = vmatpush1.msra.mxu0 %v277
    %319 = vmatprep.subr.mxu0 0.0
    %320 = vmatpush1.msra.mxu0 %v278
    %321 = vmatprep.subr.mxu0 0.0
    %322 = vmatpush1.msra.mxu0 %v279
    %323 = vmatprep.subr.mxu0 0.0
    %324 = vmatpush1.msra.mxu0 %v280
    %325 = vmatprep.subr.mxu0 0.0
    %326 = vmatpush1.msra.mxu0 %v281
    %327 = vmatprep.subr.mxu0 0.0
    %328 = vmatpush1.msra.mxu0 %v282
    %329 = vmatprep.subr.mxu0 0.0
    %330 = vmatpush1.msra.mxu0 %v283
    %331 = vmatprep.subr.mxu0 0.0
    %332 = vmatpush1.msra.mxu0 %v284
    %333 = vmatprep.subr.mxu0 0.0
    %334 = vmatpush1.msra.mxu0 %v285
    %335 = vmatprep.subr.mxu0 0.0
    %336 = vmatpush1.msra.mxu0 %v286
    %337 = vmatprep.subr.mxu0 0.0
    %338 = vmatpush1.msra.mxu0 %v287
    %339 = vmatprep.subr.mxu0 0.0
    %340 = vmatpush1.msra.mxu0 %v288
    %341 = vmatprep.subr.mxu0 0.0
    %342 = vmatpush1.msra.mxu0 %v289
    %343 = vmatprep.subr.mxu0 0.0
    %344 = vmatpush1.msra.mxu0 %v290
    %345 = vmatprep.subr.mxu0 0.0
    %346 = vmatpush1.msra.mxu0 %v291
    %347 = vmatprep.subr.mxu0 0.0
    %348 = vmatpush1.msra.mxu0 %v292
    %349 = vmatprep.subr.mxu0 0.0
    %350 = vmatpush1.msra.mxu0 %v293
    %351 = vmatprep.subr.mxu0 0.0
    %352 = vmatpush1.msra.mxu0 %v294
    %353 = vmatprep.subr.mxu0 0.0
    %354 = vmatpush1.msra.mxu0 %v295
    %355 = vmatprep.subr.mxu0 0.0
    %356 = vmatpush1.msra.mxu0 %v296
    %357 = vmatprep.subr.mxu0 0.0
    %358 = vmatpush1.msra.mxu0 %v297
    %359 = vmatprep.subr.mxu0 0.0
    %360 = vmatpush1.msra.mxu0 %v298
    %361 = vmatprep.subr.mxu0 0.0
    %362 = vmatpush1.msra.mxu0 %v299
    %363 = vmatprep.subr.mxu0 0.0
    %364 = vmatpush1.msra.mxu0 %v300
    %365 = vmatprep.subr.mxu0 0.0
    %366 = vmatpush1.msra.mxu0 %v301
    %367 = vmatprep.subr.mxu0 0.0
    %368 = vmatpush1.msra.mxu0 %v302
    %369 = vmatprep.subr.mxu0 0.0
    %370 = vmatpush1.msra.mxu0 %v303
    %371 = vmatprep.subr.mxu0 0.0
    %372 = vmatpush1.msra.mxu0 %v304
    %373 = vmatprep.subr.mxu0 0.0
    %374 = vmatpush1.msra.mxu0 %v305
    %375 = vmatprep.subr.mxu0 0.0
    %376 = vmatpush1.msra.mxu0 %v306
    %377 = vmatprep.subr.mxu0 0.0
    %378 = vmatpush1.msra.mxu0 %v307
    %379 = vmatprep.mubr.f32.mxu0 %v269
    %380 = vmatmul.mubr.f32.gmra.mrb[0].mxu0 %v268
    %v381 = vpop.f32.mrb[0].mxu0
    %v382 = vadd.f32 %v313, %v381
    %v383 = vpop.f32.mrb[0].mxu0
    %384 = vmatprep.mubr.f32.mxu0 %v271
    %385 = vmatmul.mubr.f32.gmra.mrb[0].mxu0 %v270
    %v386 = vpop.f32.mrb[0].mxu0
    %v387 = vadd.f32 %v313, %v386
    %v388 = vpop.f32.mrb[0].mxu0
    %389 = vmatprep.mubr.f32.mxu0 %v273
    %390 = vmatmul.mubr.f32.gmra.mrb[0].mxu0 %v272
    %v391 = vpop.f32.mrb[0].mxu0
    %v392 = vadd.f32 %v313, %v391
    %v393 = vpop.f32.mrb[0].mxu0
    %394 = vmatprep.mubr.f32.mxu0 %v275
    %395 = vmatmul.mubr.f32.gmra.mrb[0].mxu0 %v274
    %v396 = vpop.f32.mrb[0].mxu0
    %v397 = vadd.f32 %v313, %v396
    %v398 = vpop.f32.mrb[0].mxu0
    %399 = vdwg.mxu0
    %400 = vst [vmem:[#allocation11] sm:$0xff] %v382
    %401 = vst [vmem:[#allocation11 + $0x8] sm:$0xff] %v387
    %402 = vst [vmem:[#allocation11 + $0x10] sm:$0xff] %v392
    %403 = vst [vmem:[#allocation11 + $0x18] sm:$0xff] %v397
    // Predicated region
    $region42: #{tpu_custom_call.1} parent=1 // pred_check
      _
    $region43: #{tpu_custom_call.1} parent=1 // pred_check_branch
      %405 = sbr.rel (0) target = $region45
    $region44: #{tpu_custom_call.1} parent=1 // pred_region
      %s407 = ssub.s32 512, 512
      %408 = vsyncadd [#allocation5], %s407
      %s409 = sshll.u32 [#allocation11], 4
      %s410 = int_to_ptr.vmem [resolvable:$true] %s409
      %415 = dma.vmem_to_hbm [thread:$0]  %s410, 512, %s6, [#allocation5], 128, 128, 8
    $region45: #{tpu_custom_call.1} parent=1 // pred_fallthru
      _
    // Predicated region
    $region46: #{tpu_custom_call.1} parent=1 // pred_check
      _
    $region47: #{tpu_custom_call.1} parent=1 // pred_check_branch
      %417 = sbr.rel (0) target = $region49
    $region48: #{tpu_custom_call.1} parent=1 // pred_region
      %418 = dma.done [#allocation5], 512
    $region49: #{tpu_custom_call.1} parent=1 // pred_fallthru
      _
    %419 = vsyncpa [#allocation4], 1
    %420 = vsyncpa [#allocation7], 1
    %421 = vsyncpa [#allocation10], 1
    %422 = vsyncpa [#allocation5], 1

</llo_original>
